<compile_context>
chip_gen: v7x
topology: tpu7x:2x2x1
jax: 0.10.0
libtpu: 0.0.40
codegen_flags: <defaults>
</compile_context>

<pallas_src>
import jax
import jax.numpy as jnp
from jax.experimental import pallas as pl
from jax.experimental.pallas import tpu as pltpu


CIN = 2           # channels consumed by ResNet_pair (x_image[:, 0:2])
COUT = 16         # stand-in conv output channels
KSIZE = 3         # conv kernel size
NUM_LABELS = 5    # num_t_order_labels


def _round_up(x, m):
    return (x + m - 1) // m * m


# ----------------------------- fused Pallas kernel ---------------------------

def fused_resnet_kernel(patches_ref, conv_w_ref, conv_b_ref, pool_ref,
                        fc_w_ref, fc_b_ref, out_ref):
    """conv(im2col matmul) + bias + ReLU + global-avg-pool + FC, all in VMEM.

    patches_ref: [K_pad, M_pad]  bf16  im2col patches, transposed (lane-dense M)
    conv_w_ref:  [Cout, K_pad]   bf16  conv weight reshaped (zero-padded K)
    conv_b_ref:  [Cout, 1]       f32
    pool_ref:    [M_pad, B]      f32   pool[m, b] = 1/S if position m belongs to
                                       batch b, 0 for padded positions
    fc_w_ref:    [L, Cout]       f32
    fc_b_ref:    [L, 1]          f32
    out_ref:     [L, B]          f32   transposed logits
    """
    # Conv as one lane-dense MXU matmul (bf16 operands, f32 accumulation).
    conv = jnp.dot(conv_w_ref[...], patches_ref[...],
                   preferred_element_type=jnp.float32)           # [Cout, M_pad]
    conv = jnp.maximum(conv + conv_b_ref[...], 0.0)              # bias + ReLU (f32)
    # Global average pool folded into a matmul; 1/S is baked into pool_ref and
    # padded columns have pool == 0, so they contribute nothing.
    pooled_t = jnp.dot(conv, pool_ref[...],
                       preferred_element_type=jnp.float32)       # [Cout, B]
    # Final linear head, computed transposed (no in-kernel transpose needed).
    out_ref[...] = (jnp.dot(fc_w_ref[...], pooled_t,
                            preferred_element_type=jnp.float32)
                    + fc_b_ref[...])                             # [L, B]


def _fused_call(patches_t, conv_w, conv_b, pool, fc_w, fc_b):
    k_pad, m_pad = patches_t.shape
    cout = conv_w.shape[0]
    labels = fc_w.shape[0]
    batch = pool.shape[1]
    return pl.pallas_call(
        fused_resnet_kernel,
        out_shape=jax.ShapeDtypeStruct((labels, batch), jnp.float32),
        grid=(1,),
        in_specs=[
            pl.BlockSpec((k_pad, m_pad), lambda i: (0, 0)),
            pl.BlockSpec((cout, k_pad), lambda i: (0, 0)),
            pl.BlockSpec((cout, 1), lambda i: (0, 0)),
            pl.BlockSpec((m_pad, batch), lambda i: (0, 0)),
            pl.BlockSpec((labels, cout), lambda i: (0, 0)),
            pl.BlockSpec((labels, 1), lambda i: (0, 0)),
        ],
        out_specs=pl.BlockSpec((labels, batch), lambda i: (0, 0)),
        compiler_params=pltpu.CompilerParams(
            dimension_semantics=("arbitrary",)),
    )(patches_t, conv_w, conv_b, pool, fc_w, fc_b)


# ------------------------------- glue (JAX) ----------------------------------

def _im2col_transposed(x, k_pad, m_pad):
    """x: [B, Cin, D, H, W] -> bf16 [k_pad, m_pad] patchesT.

    Row index K = (cin, kd, kh, kw) major-to-minor (matches conv_w reshape);
    col index M = (b, d, h, w). Padded rows/cols are zero.
    This runs inside the same jit (traced XLA), only the bf16 slab hits HBM.
    """
    B, Cin, D, H, W = x.shape
    K = Cin * KSIZE ** 3
    M = B * D * H * W
    xp = jnp.pad(x, ((0, 0), (0, 0), (1, 1), (1, 1), (1, 1)))
    cols = []
    for kd in range(KSIZE):
        for kh in range(KSIZE):
            for kw in range(KSIZE):
                cols.append(xp[:, :, kd:kd + D, kh:kh + H, kw:kw + W])
    patches = jnp.stack(cols, axis=2)                    # [B, Cin, 27, D, H, W]
    patches_t = patches.transpose(1, 2, 0, 3, 4, 5).reshape(K, M)
    patches_t = jnp.pad(patches_t, ((0, k_pad - K), (0, m_pad - M)))
    return patches_t.astype(jnp.bfloat16)


def _pool_matrix(batch, spatial, m_pad):
    """[m_pad, batch] matrix with 1/S where flat position m belongs to batch b."""
    m_idx = jax.lax.broadcasted_iota(jnp.int32, (m_pad, batch), 0)
    b_idx = jax.lax.broadcasted_iota(jnp.int32, (m_pad, batch), 1)
    valid = m_idx < batch * spatial
    return jnp.where(valid & ((m_idx // spatial) == b_idx),
                     jnp.float32(1.0 / spatial), jnp.float32(0.0))


def init_params(key, cin=CIN, cout=COUT, k=KSIZE, num_labels=NUM_LABELS):
    k1, k2, k3, k4 = jax.random.split(key, 4)
    conv_w = jax.random.normal(k1, (cout, cin, k, k, k), jnp.float32) * 0.05
    conv_b = jax.random.normal(k2, (cout,), jnp.float32) * 0.05
    fc_w = jax.random.normal(k3, (num_labels, cout), jnp.float32) * 0.05
    fc_b = jax.random.normal(k4, (num_labels,), jnp.float32) * 0.05
    K = cin * k ** 3                                   # 54
    k_pad = _round_up(K, 16)                           # 64: aligned bf16 packing
    conv_w2d = jnp.pad(conv_w.reshape(cout, K), ((0, 0), (0, k_pad - K)))
    return {
        "conv_w": conv_w2d.astype(jnp.bfloat16),       # [Cout, K_pad] MXU operand
        "conv_b": conv_b.reshape(cout, 1),             # [Cout, 1] f32
        "fc_w": fc_w,                                  # [L, Cout] f32
        "fc_b": fc_b.reshape(num_labels, 1),           # [L, 1] f32
    }


@jax.jit
def resnet_pair_forward(x_image, params):
    # === ResNet_pair.forward ===
    x1_image = x_image[:, 0:2, :, :, :]                          # channel slice 0:2
    # === modelA (synthetic 3-D ResNet stand-in), fully fused in one kernel ===
    B, Cin, D, H, W = x1_image.shape
    S = D * H * W
    M = B * S
    k_pad = params["conv_w"].shape[1]
    m_pad = _round_up(M, 128)                                    # lane-dense M
    patches_t = _im2col_transposed(x1_image, k_pad, m_pad)       # bf16 [K_pad, M_pad]
    pool = _pool_matrix(B, S, m_pad)                             # f32 [M_pad, B]
    out_t = _fused_call(patches_t, params["conv_w"], params["conv_b"],
                        pool, params["fc_w"], params["fc_b"])    # [L, B]
    out_t_order1 = out_t.T                                       # [B, L]
    return out_t_order1


if __name__ == "__main__":
    key = jax.random.PRNGKey(0)
    # x_image: [B=2, C=4, D=8, H=8, W=8] (5-D, NCDHW) — forward only uses channels 0:2
    x_image = jax.random.normal(key, (2, 4, 8, 8, 8), jnp.float32)
    params = init_params(jax.random.PRNGKey(42))

    out = resnet_pair_forward(x_image, params)
    jax.block_until_ready(out)
    assert out.shape == (2, NUM_LABELS) and out.dtype == jnp.float32
    print("KERNEL_OK")
</pallas_src>

<mosaic_0001>
module attributes {stable_mosaic.version = 11 : i64} {
  func.func @fused_resnet_kernel(%arg0: i32, %arg1: memref<64x1024xbf16, #tpu.memory_space<vmem>>, %arg2: memref<16x64xbf16, #tpu.memory_space<vmem>>, %arg3: memref<16x1xf32, #tpu.memory_space<vmem>>, %arg4: memref<1024x2xf32, #tpu.memory_space<vmem>>, %arg5: memref<5x16xf32, #tpu.memory_space<vmem>>, %arg6: memref<5x1xf32, #tpu.memory_space<vmem>>, %arg7: memref<5x2xf32, #tpu.memory_space<vmem>>) attributes {dimension_semantics = [#tpu.dimension_semantics<arbitrary>], iteration_bounds = array<i64: 1>, scalar_prefetch = 0 : i64, scratch_operands = 0 : i64, tpu.core_type = #tpu.core_type<tc>, window_params = [{pipeline_mode = #tpu.pipeline_mode<synchronous>, transform_indices = @transform_0, window_bounds = array<i64: 64, 1024>}, {pipeline_mode = #tpu.pipeline_mode<synchronous>, transform_indices = @transform_1, window_bounds = array<i64: 16, 64>}, {pipeline_mode = #tpu.pipeline_mode<synchronous>, transform_indices = @transform_2, window_bounds = array<i64: 16, 1>}, {pipeline_mode = #tpu.pipeline_mode<synchronous>, transform_indices = @transform_3, window_bounds = array<i64: 1024, 2>}, {pipeline_mode = #tpu.pipeline_mode<synchronous>, transform_indices = @transform_4, window_bounds = array<i64: 5, 16>}, {pipeline_mode = #tpu.pipeline_mode<synchronous>, transform_indices = @transform_5, window_bounds = array<i64: 5, 1>}, {pipeline_mode = #tpu.pipeline_mode<synchronous>, transform_indices = @transform_6, window_bounds = array<i64: 5, 2>}]} {
    %c0 = arith.constant 0 : index
    %c0_0 = arith.constant 0 : index
    %0 = vector.load %arg2[%c0, %c0_0] : memref<16x64xbf16, #tpu.memory_space<vmem>>, vector<16x64xbf16>
    %c0_1 = arith.constant 0 : index
    %c0_2 = arith.constant 0 : index
    %1 = vector.load %arg1[%c0_1, %c0_2] : memref<64x1024xbf16, #tpu.memory_space<vmem>>, vector<64x1024xbf16>
    %cst = arith.constant dense<0.000000e+00> : vector<16x1024xf32>
    %2 = tpu.matmul %0, %1, %cst {dimension_numbers = #tpu.dot_dimension_numbers<[1], [0], [0], [1], [0, 0, 1, 1], [], []>} : vector<16x64xbf16>, vector<64x1024xbf16>, vector<16x1024xf32> -> vector<16x1024xf32>
    %c0_3 = arith.constant 0 : index
    %c0_4 = arith.constant 0 : index
    %3 = vector.load %arg3[%c0_3, %c0_4] : memref<16x1xf32, #tpu.memory_space<vmem>>, vector<16x1xf32>
    %4 = vector.broadcast %3 : vector<16x1xf32> to vector<16x1024xf32>
    %5 = arith.addf %2, %4 : vector<16x1024xf32>
    %cst_5 = arith.constant 0.000000e+00 : f32
    %6 = vector.broadcast %cst_5 : f32 to vector<16x1024xf32>
    %7 = arith.maximumf %5, %6 : vector<16x1024xf32>
    %c0_6 = arith.constant 0 : index
    %c0_7 = arith.constant 0 : index
    %8 = vector.load %arg4[%c0_6, %c0_7] : memref<1024x2xf32, #tpu.memory_space<vmem>>, vector<1024x2xf32>
    %cst_8 = arith.constant dense<0.000000e+00> : vector<16x2xf32>
    %9 = tpu.matmul %7, %8, %cst_8 {dimension_numbers = #tpu.dot_dimension_numbers<[1], [0], [0], [1], [0, 0, 1, 1], [], []>} : vector<16x1024xf32>, vector<1024x2xf32>, vector<16x2xf32> -> vector<16x2xf32>
    %c0_9 = arith.constant 0 : index
    %c0_10 = arith.constant 0 : index
    %10 = vector.load %arg5[%c0_9, %c0_10] : memref<5x16xf32, #tpu.memory_space<vmem>>, vector<5x16xf32>
    %cst_11 = arith.constant dense<0.000000e+00> : vector<5x2xf32>
    %11 = tpu.matmul %10, %9, %cst_11 {dimension_numbers = #tpu.dot_dimension_numbers<[1], [0], [0], [1], [0, 0, 1, 1], [], []>} : vector<5x16xf32>, vector<16x2xf32>, vector<5x2xf32> -> vector<5x2xf32>
    %c0_12 = arith.constant 0 : index
    %c0_13 = arith.constant 0 : index
    %12 = vector.load %arg6[%c0_12, %c0_13] : memref<5x1xf32, #tpu.memory_space<vmem>>, vector<5x1xf32>
    %13 = vector.broadcast %12 : vector<5x1xf32> to vector<5x2xf32>
    %14 = arith.addf %11, %13 : vector<5x2xf32>
    %c0_14 = arith.constant 0 : index
    %c0_15 = arith.constant 0 : index
    %15 = vector.load %arg7[%c0_14, %c0_15] : memref<5x2xf32, #tpu.memory_space<vmem>>, vector<5x2xf32>
    tpu.vector_store %arg7[%c0_14, %c0_15], %14 {strides = array<i32>} : memref<5x2xf32, #tpu.memory_space<vmem>>, vector<5x2xf32>,
    return
  }
  func.func @transform_0(%arg0: i32) -> (i32, i32) {
    %c0_i32 = arith.constant 0 : i32
    %c0_i32_0 = arith.constant 0 : i32
    %c0_i32_1 = arith.constant 0 : i32
    return %c0_i32, %c0_i32_0 : i32, i32
  }
  func.func @transform_1(%arg0: i32) -> (i32, i32) {
    %c0_i32 = arith.constant 0 : i32
    %c0_i32_0 = arith.constant 0 : i32
    %c0_i32_1 = arith.constant 0 : i32
    return %c0_i32, %c0_i32_0 : i32, i32
  }
  func.func @transform_2(%arg0: i32) -> (i32, i32) {
    %c0_i32 = arith.constant 0 : i32
    %c0_i32_0 = arith.constant 0 : i32
    %c0_i32_1 = arith.constant 0 : i32
    return %c0_i32, %c0_i32_0 : i32, i32
  }
  func.func @transform_3(%arg0: i32) -> (i32, i32) {
    %c0_i32 = arith.constant 0 : i32
    %c0_i32_0 = arith.constant 0 : i32
    %c0_i32_1 = arith.constant 0 : i32
    return %c0_i32, %c0_i32_0 : i32, i32
  }
  func.func @transform_4(%arg0: i32) -> (i32, i32) {
    %c0_i32 = arith.constant 0 : i32
    %c0_i32_0 = arith.constant 0 : i32
    %c0_i32_1 = arith.constant 0 : i32
    return %c0_i32, %c0_i32_0 : i32, i32
  }
  func.func @transform_5(%arg0: i32) -> (i32, i32) {
    %c0_i32 = arith.constant 0 : i32
    %c0_i32_0 = arith.constant 0 : i32
    %c0_i32_1 = arith.constant 0 : i32
    return %c0_i32, %c0_i32_0 : i32, i32
  }
  func.func @transform_6(%arg0: i32) -> (i32, i32) {
    %c0_i32 = arith.constant 0 : i32
    %c0_i32_0 = arith.constant 0 : i32
    %c0_i32_1 = arith.constant 0 : i32
    return %c0_i32, %c0_i32_0 : i32, i32
  }
}

</mosaic_0001>

<llo_original>
// kernel: resnet_pair_forward.1
$region0: #{resnet_pair_forward.1}
  #allocation0 [shape = 'u32[]', space=smem, size = 0x4, offset = 0x4, fixed_abs, tag = 'smem constant byte address 0x4 - core index']
  #allocation1 [shape = 'u32[144,128]{1,0:T(1,128)}', space=vmem, size = 0x12000, scoped, tag = 'internal scratch']
  %s0 = inlined_call_operand.vmem [shape: bf16[64,1024], index: 0, kind: input, shape index: {}]
  %s1 = inlined_call_operand.vmem [shape: bf16[16,64], index: 1, kind: input, shape index: {}]
  %s2 = inlined_call_operand.vmem [shape: f32[16,1], index: 2, kind: input, shape index: {}]
  %s3 = inlined_call_operand.vmem [shape: f32[1024,2], index: 3, kind: input, shape index: {}]
  %s4 = inlined_call_operand.vmem [shape: f32[5,16], index: 4, kind: input, shape index: {}]
  %s5 = inlined_call_operand.vmem [shape: f32[5,1], index: 5, kind: input, shape index: {}]
  %s6 = inlined_call_operand.vmem [shape: f32[5,2], index: 6, kind: output, shape index: {}]
  %s7 = sld [smem:[#allocation0]]
  $region34: #{resnet_pair_forward.1} parent=0
    _
  %s9 = ssub.s32 1, %s7
  %s10 = scalar_select 0, %s9, %s7
  // Predicated region
  $region2: #{resnet_pair_forward.1} parent=0 // pred_check
    _
  $region3: #{resnet_pair_forward.1} parent=0 // pred_check_branch
    %12 = sbr.rel (0) target = $region5
  $region4: #{resnet_pair_forward.1} parent=0 // pred_region
    _
  $region5: #{resnet_pair_forward.1} parent=0 // pred_fallthru
    _
  // Predicated region
  $region6: #{resnet_pair_forward.1} parent=0 // pred_check
    _
  $region7: #{resnet_pair_forward.1} parent=0 // pred_check_branch
    %14 = sbr.rel (0) target = $region9
  $region8: #{resnet_pair_forward.1} parent=0 // pred_region
    _
  $region9: #{resnet_pair_forward.1} parent=0 // pred_fallthru
    _
  // Predicated region
  $region10: #{resnet_pair_forward.1} parent=0 // pred_check
    _
  $region11: #{resnet_pair_forward.1} parent=0 // pred_check_branch
    %16 = sbr.rel (0) target = $region13
  $region12: #{resnet_pair_forward.1} parent=0 // pred_region
    _
  $region13: #{resnet_pair_forward.1} parent=0 // pred_fallthru
    _
  // Predicated region
  $region14: #{resnet_pair_forward.1} parent=0 // pred_check
    _
  $region15: #{resnet_pair_forward.1} parent=0 // pred_check_branch
    %18 = sbr.rel (0) target = $region17
  $region16: #{resnet_pair_forward.1} parent=0 // pred_region
    _
  $region17: #{resnet_pair_forward.1} parent=0 // pred_fallthru
    _
  // Predicated region
  $region18: #{resnet_pair_forward.1} parent=0 // pred_check
    _
  $region19: #{resnet_pair_forward.1} parent=0 // pred_check_branch
    %20 = sbr.rel (0) target = $region21
  $region20: #{resnet_pair_forward.1} parent=0 // pred_region
    _
  $region21: #{resnet_pair_forward.1} parent=0 // pred_fallthru
    _
  // Predicated region
  $region22: #{resnet_pair_forward.1} parent=0 // pred_check
    _
  $region23: #{resnet_pair_forward.1} parent=0 // pred_check_branch
    %22 = sbr.rel (0) target = $region25
  $region24: #{resnet_pair_forward.1} parent=0 // pred_region
    _
  $region25: #{resnet_pair_forward.1} parent=0 // pred_fallthru
    _
  %v24 = vld [vmem:[%s1] sm:$0xf]
  %v25 = vld [vmem:[%s1 + $0x4] sm:$0xf]
  %v26 = vld [vmem:[%s0] sm:$0xff]
  %v27 = vld [vmem:[%s0 + $0x8] sm:$0xff]
  %v28 = vld [vmem:[%s0 + $0x10] sm:$0xff]
  %v29 = vld [vmem:[%s0 + $0x18] sm:$0xff]
  %v30 = vld [vmem:[%s0 + $0x20] sm:$0xff]
  %v31 = vld [vmem:[%s0 + $0x28] sm:$0xff]
  %v32 = vld [vmem:[%s0 + $0x30] sm:$0xff]
  %v33 = vld [vmem:[%s0 + $0x38] sm:$0xff]
  %v34 = vld [vmem:[%s0 + $0x40] sm:$0xff]
  %v35 = vld [vmem:[%s0 + $0x48] sm:$0xff]
  %v36 = vld [vmem:[%s0 + $0x50] sm:$0xff]
  %v37 = vld [vmem:[%s0 + $0x58] sm:$0xff]
  %v38 = vld [vmem:[%s0 + $0x60] sm:$0xff]
  %v39 = vld [vmem:[%s0 + $0x68] sm:$0xff]
  %v40 = vld [vmem:[%s0 + $0x70] sm:$0xff]
  %v41 = vld [vmem:[%s0 + $0x78] sm:$0xff]
  %v42 = vld [vmem:[%s0 + $0x80] sm:$0xff]
  %v43 = vld [vmem:[%s0 + $0x88] sm:$0xff]
  %v44 = vld [vmem:[%s0 + $0x90] sm:$0xff]
  %v45 = vld [vmem:[%s0 + $0x98] sm:$0xff]
  %v46 = vld [vmem:[%s0 + $0xa0] sm:$0xff]
  %v47 = vld [vmem:[%s0 + $0xa8] sm:$0xff]
  %v48 = vld [vmem:[%s0 + $0xb0] sm:$0xff]
  %v49 = vld [vmem:[%s0 + $0xb8] sm:$0xff]
  %v50 = vld [vmem:[%s0 + $0xc0] sm:$0xff]
  %v51 = vld [vmem:[%s0 + $0xc8] sm:$0xff]
  %v52 = vld [vmem:[%s0 + $0xd0] sm:$0xff]
  %v53 = vld [vmem:[%s0 + $0xd8] sm:$0xff]
  %v54 = vld [vmem:[%s0 + $0xe0] sm:$0xff]
  %v55 = vld [vmem:[%s0 + $0xe8] sm:$0xff]
  %v56 = vld [vmem:[%s0 + $0xf0] sm:$0xff]
  %v57 = vld [vmem:[%s0 + $0xf8] sm:$0xff]
  %v58 = vld [vmem:[%s2] sm:$0xff]
  %v59 = vld [vmem:[%s2 + $0x8] sm:$0xff]
  %61 = vset.pattern.permute.xlu0 0
  %62 = vperm.xlu0 %61, %v58
  %v63 = vpop.permute.xlu0 %62
  %66 = vset.pattern.permute.xlu0 0
  %67 = vperm.xlu0 %66, %v59
  %v68 = vpop.permute.xlu0 %67
  %v72 = vunpack.c.l.b16 %v24
  %v73 = vunpack.c.l.b16 %v25
  %v74 = vpack.c.b16 %v73, %v72
  %v107 = vunpack.c.l.b16 %v26
  %v108 = vunpack.c.h.b16 %v26
  %v109 = vunpack.c.l.b16 %v27
  %v110 = vunpack.c.h.b16 %v27
  %v111 = vunpack.c.l.b16 %v28
  %v112 = vunpack.c.h.b16 %v28
  %v113 = vunpack.c.l.b16 %v29
  %v114 = vunpack.c.h.b16 %v29
  %v115 = vunpack.c.l.b16 %v30
  %v116 = vunpack.c.h.b16 %v30
  %v117 = vunpack.c.l.b16 %v31
  %v118 = vunpack.c.h.b16 %v31
  %v119 = vunpack.c.l.b16 %v32
  %v120 = vunpack.c.h.b16 %v32
  %v121 = vunpack.c.l.b16 %v33
  %v122 = vunpack.c.h.b16 %v33
  %v123 = vunpack.c.l.b16 %v34
  %v124 = vunpack.c.h.b16 %v34
  %v125 = vunpack.c.l.b16 %v35
  %v126 = vunpack.c.h.b16 %v35
  %v127 = vunpack.c.l.b16 %v36
  %v128 = vunpack.c.h.b16 %v36
  %v129 = vunpack.c.l.b16 %v37
  %v130 = vunpack.c.h.b16 %v37
  %v131 = vunpack.c.l.b16 %v38
  %v132 = vunpack.c.h.b16 %v38
  %v133 = vunpack.c.l.b16 %v39
  %v134 = vunpack.c.h.b16 %v39
  %v135 = vunpack.c.l.b16 %v40
  %v136 = vunpack.c.h.b16 %v40
  %v137 = vunpack.c.l.b16 %v41
  %v138 = vunpack.c.h.b16 %v41
  %v139 = vunpack.c.l.b16 %v42
  %v140 = vunpack.c.h.b16 %v42
  %v141 = vunpack.c.l.b16 %v43
  %v142 = vunpack.c.h.b16 %v43
  %v143 = vunpack.c.l.b16 %v44
  %v144 = vunpack.c.h.b16 %v44
  %v145 = vunpack.c.l.b16 %v45
  %v146 = vunpack.c.h.b16 %v45
  %v147 = vunpack.c.l.b16 %v46
  %v148 = vunpack.c.h.b16 %v46
  %v149 = vunpack.c.l.b16 %v47
  %v150 = vunpack.c.h.b16 %v47
  %v151 = vunpack.c.l.b16 %v48
  %v152 = vunpack.c.h.b16 %v48
  %v153 = vunpack.c.l.b16 %v49
  %v154 = vunpack.c.h.b16 %v49
  %v155 = vunpack.c.l.b16 %v50
  %v156 = vunpack.c.h.b16 %v50
  %v157 = vunpack.c.l.b16 %v51
  %v158 = vunpack.c.h.b16 %v51
  %v159 = vunpack.c.l.b16 %v52
  %v160 = vunpack.c.h.b16 %v52
  %v161 = vunpack.c.l.b16 %v53
  %v162 = vunpack.c.h.b16 %v53
  %v163 = vunpack.c.l.b16 %v54
  %v164 = vunpack.c.h.b16 %v54
  %v165 = vunpack.c.l.b16 %v55
  %v166 = vunpack.c.h.b16 %v55
  %v167 = vunpack.c.l.b16 %v56
  %v168 = vunpack.c.h.b16 %v56
  %v169 = vunpack.c.l.b16 %v57
  %v170 = vunpack.c.h.b16 %v57
  %v171 = vpack.c.b16 %v115, %v107
  %v172 = vpack.c.b16 %v116, %v108
  %v173 = vpack.c.b16 %v117, %v109
  %v174 = vpack.c.b16 %v118, %v110
  %v175 = vpack.c.b16 %v119, %v111
  %v176 = vpack.c.b16 %v120, %v112
  %v177 = vpack.c.b16 %v121, %v113
  %v178 = vpack.c.b16 %v122, %v114
  %v179 = vpack.c.b16 %v131, %v123
  %v180 = vpack.c.b16 %v132, %v124
  %v181 = vpack.c.b16 %v133, %v125
  %v182 = vpack.c.b16 %v134, %v126
  %v183 = vpack.c.b16 %v135, %v127
  %v184 = vpack.c.b16 %v136, %v128
  %v185 = vpack.c.b16 %v137, %v129
  %v186 = vpack.c.b16 %v138, %v130
  %v187 = vpack.c.b16 %v147, %v139
  %v188 = vpack.c.b16 %v148, %v140
  %v189 = vpack.c.b16 %v149, %v141
  %v190 = vpack.c.b16 %v150, %v142
  %v191 = vpack.c.b16 %v151, %v143
  %v192 = vpack.c.b16 %v152, %v144
  %v193 = vpack.c.b16 %v153, %v145
  %v194 = vpack.c.b16 %v154, %v146
  %v195 = vpack.c.b16 %v163, %v155
  %v196 = vpack.c.b16 %v164, %v156
  %v197 = vpack.c.b16 %v165, %v157
  %v198 = vpack.c.b16 %v166, %v158
  %v199 = vpack.c.b16 %v167, %v159
  %v200 = vpack.c.b16 %v168, %v160
  %v201 = vpack.c.b16 %v169, %v161
  %v202 = vpack.c.b16 %v170, %v162
  %vm235 = vcmask 523264
  %v237 = vsel %vm235, %v74, 0
  %239 = vmatprep.subr.bf16.mxu0 %v172
  %240 = vmatpush1.bf16.msra.mxu0 %v171
  %241 = vmatprep.subr.bf16.mxu0 %v180
  %242 = vmatpush1.bf16.msra.mxu0 %v179
  %243 = vmatprep.subr.bf16.mxu0 %v188
  %244 = vmatpush1.bf16.msra.mxu0 %v187
  %245 = vmatprep.subr.bf16.mxu0 %v196
  %246 = vmatpush1.bf16.msra.mxu0 %v195
  %247 = vmatprep.subr.bf16.mxu0 0
  %248 = vmatpush1.bf16.msra.mxu0 0
  %249 = vmatprep.subr.bf16.mxu0 0
  %250 = vmatpush1.bf16.msra.mxu0 0
  %251 = vmatprep.subr.bf16.mxu0 0
  %252 = vmatpush1.bf16.msra.mxu0 0
  %253 = vmatprep.subr.bf16.mxu0 0
  %254 = vmatpush1.bf16.msra.mxu0 0
  %255 = vmatprep.subr.bf16.mxu0 0
  %256 = vmatpush1.bf16.msra.mxu0 0
  %257 = vmatprep.subr.bf16.mxu0 0
  %258 = vmatpush1.bf16.msra.mxu0 0
  %259 = vmatprep.subr.bf16.mxu0 0
  %260 = vmatpush1.bf16.msra.mxu0 0
  %261 = vmatprep.subr.bf16.mxu0 0
  %262 = vmatpush1.bf16.msra.mxu0 0
  %263 = vmatprep.subr.bf16.mxu0 0
  %264 = vmatpush1.bf16.msra.mxu0 0
  %265 = vmatprep.subr.bf16.mxu0 0
  %266 = vmatpush1.bf16.msra.mxu0 0
  %267 = vmatprep.subr.bf16.mxu0 0
  %268 = vmatpush1.bf16.msra.mxu0 0
  %269 = vmatprep.subr.bf16.mxu0 0
  %270 = vmatpush1.bf16.msra.mxu0 0
  %271 = vmatprep.mubr.bf16.mxu0 0
  %272 = vmatmul.mubr.bf16.gmra.mrb[0].mxu0 %v237
  %v273 = vpop.f32.mrb[0].mxu0
  %v274 = vadd.f32 %v63, %v273
  %v275 = vpop.f32.mrb[0].mxu0
  %v276 = vadd.f32 %v63, %v275
  %v277 = vpop.f32.mrb[0].mxu0
  %v278 = vadd.f32 %v68, %v277
  %v279 = vpop.f32.mrb[0].mxu0
  %v280 = vadd.f32 %v68, %v279
  %281 = vdwg.mxu0
  %282 = vmatprep.subr.bf16.mxu0 %v174
  %283 = vmatpush1.bf16.msra.mxu0 %v173
  %284 = vmatprep.subr.bf16.mxu0 %v182
  %285 = vmatpush1.bf16.msra.mxu0 %v181
  %286 = vmatprep.subr.bf16.mxu0 %v190
  %287 = vmatpush1.bf16.msra.mxu0 %v189
  %288 = vmatprep.subr.bf16.mxu0 %v198
  %289 = vmatpush1.bf16.msra.mxu0 %v197
  %290 = vmatprep.subr.bf16.mxu0 0
  %291 = vmatpush1.bf16.msra.mxu0 0
  %292 = vmatprep.subr.bf16.mxu0 0
  %293 = vmatpush1.bf16.msra.mxu0 0
  %294 = vmatprep.subr.bf16.mxu0 0
  %295 = vmatpush1.bf16.msra.mxu0 0
  %296 = vmatprep.subr.bf16.mxu0 0
  %297 = vmatpush1.bf16.msra.mxu0 0
  %298 = vmatprep.subr.bf16.mxu0 0
  %299 = vmatpush1.bf16.msra.mxu0 0
  %300 = vmatprep.subr.bf16.mxu0 0
  %301 = vmatpush1.bf16.msra.mxu0 0
  %302 = vmatprep.subr.bf16.mxu0 0
  %303 = vmatpush1.bf16.msra.mxu0 0
  %304 = vmatprep.subr.bf16.mxu0 0
  %305 = vmatpush1.bf16.msra.mxu0 0
  %306 = vmatprep.subr.bf16.mxu0 0
  %307 = vmatpush1.bf16.msra.mxu0 0
  %308 = vmatprep.subr.bf16.mxu0 0
  %309 = vmatpush1.bf16.msra.mxu0 0
  %310 = vmatprep.subr.bf16.mxu0 0
  %311 = vmatpush1.bf16.msra.mxu0 0
  %312 = vmatprep.subr.bf16.mxu0 0
  %313 = vmatpush1.bf16.msra.mxu0 0
  %314 = vmatprep.mubr.bf16.mxu0 0
  %315 = vmatmul.mubr.bf16.gmra.mrb[0].mxu0 %v237
  %v316 = vpop.f32.mrb[0].mxu0
  %v317 = vadd.f32 %v63, %v316
  %v318 = vpop.f32.mrb[0].mxu0
  %v319 = vadd.f32 %v63, %v318
  %v320 = vpop.f32.mrb[0].mxu0
  %v321 = vadd.f32 %v68, %v320
  %v322 = vpop.f32.mrb[0].mxu0
  %v323 = vadd.f32 %v68, %v322
  %324 = vdwg.mxu0
  %325 = vmatprep.subr.bf16.mxu0 %v176
  %326 = vmatpush1.bf16.msra.mxu0 %v175
  %327 = vmatprep.subr.bf16.mxu0 %v184
  %328 = vmatpush1.bf16.msra.mxu0 %v183
  %329 = vmatprep.subr.bf16.mxu0 %v192
  %330 = vmatpush1.bf16.msra.mxu0 %v191
  %331 = vmatprep.subr.bf16.mxu0 %v200
  %332 = vmatpush1.bf16.msra.mxu0 %v199
  %333 = vmatprep.subr.bf16.mxu0 0
  %334 = vmatpush1.bf16.msra.mxu0 0
  %335 = vmatprep.subr.bf16.mxu0 0
  %336 = vmatpush1.bf16.msra.mxu0 0
  %337 = vmatprep.subr.bf16.mxu0 0
  %338 = vmatpush1.bf16.msra.mxu0 0
  %339 = vmatprep.subr.bf16.mxu0 0
  %340 = vmatpush1.bf16.msra.mxu0 0
  %341 = vmatprep.subr.bf16.mxu0 0
  %342 = vmatpush1.bf16.msra.mxu0 0
  %343 = vmatprep.subr.bf16.mxu0 0
  %344 = vmatpush1.bf16.msra.mxu0 0
  %345 = vmatprep.subr.bf16.mxu0 0
  %346 = vmatpush1.bf16.msra.mxu0 0
  %347 = vmatprep.subr.bf16.mxu0 0
  %348 = vmatpush1.bf16.msra.mxu0 0
  %349 = vmatprep.subr.bf16.mxu0 0
  %350 = vmatpush1.bf16.msra.mxu0 0
  %351 = vmatprep.subr.bf16.mxu0 0
  %352 = vmatpush1.bf16.msra.mxu0 0
  %353 = vmatprep.subr.bf16.mxu0 0
  %354 = vmatpush1.bf16.msra.mxu0 0
  %355 = vmatprep.subr.bf16.mxu0 0
  %356 = vmatpush1.bf16.msra.mxu0 0
  %357 = vmatprep.mubr.bf16.mxu0 0
  %358 = vmatmul.mubr.bf16.gmra.mrb[0].mxu0 %v237
  %v359 = vpop.f32.mrb[0].mxu0
  %v360 = vadd.f32 %v63, %v359
  %v361 = vpop.f32.mrb[0].mxu0
  %v362 = vadd.f32 %v63, %v361
  %v363 = vpop.f32.mrb[0].mxu0
  %v364 = vadd.f32 %v68, %v363
  %v365 = vpop.f32.mrb[0].mxu0
  %v366 = vadd.f32 %v68, %v365
  %367 = vdwg.mxu0
  %368 = vmatprep.subr.bf16.mxu0 %v178
  %369 = vmatpush1.bf16.msra.mxu0 %v177
  %370 = vmatprep.subr.bf16.mxu0 %v186
  %371 = vmatpush1.bf16.msra.mxu0 %v185
  %372 = vmatprep.subr.bf16.mxu0 %v194
  %373 = vmatpush1.bf16.msra.mxu0 %v193
  %374 = vmatprep.subr.bf16.mxu0 %v202
  %375 = vmatpush1.bf16.msra.mxu0 %v201
  %376 = vmatprep.subr.bf16.mxu0 0
  %377 = vmatpush1.bf16.msra.mxu0 0
  %378 = vmatprep.subr.bf16.mxu0 0
  %379 = vmatpush1.bf16.msra.mxu0 0
  %380 = vmatprep.subr.bf16.mxu0 0
  %381 = vmatpush1.bf16.msra.mxu0 0
  %382 = vmatprep.subr.bf16.mxu0 0
  %383 = vmatpush1.bf16.msra.mxu0 0
  %384 = vmatprep.subr.bf16.mxu0 0
  %385 = vmatpush1.bf16.msra.mxu0 0
  %386 = vmatprep.subr.bf16.mxu0 0
  %387 = vmatpush1.bf16.msra.mxu0 0
  %388 = vmatprep.subr.bf16.mxu0 0
  %389 = vmatpush1.bf16.msra.mxu0 0
  %390 = vmatprep.subr.bf16.mxu0 0
  %391 = vmatpush1.bf16.msra.mxu0 0
  %392 = vmatprep.subr.bf16.mxu0 0
  %393 = vmatpush1.bf16.msra.mxu0 0
  %394 = vmatprep.subr.bf16.mxu0 0
  %395 = vmatpush1.bf16.msra.mxu0 0
  %396 = vmatprep.subr.bf16.mxu0 0
  %397 = vmatpush1.bf16.msra.mxu0 0
  %398 = vmatprep.subr.bf16.mxu0 0
  %399 = vmatpush1.bf16.msra.mxu0 0
  %400 = vmatprep.mubr.bf16.mxu0 0
  %401 = vmatmul.mubr.bf16.gmra.mrb[0].mxu0 %v237
  %v402 = vpop.f32.mrb[0].mxu0
  %v403 = vadd.f32 %v63, %v402
  %v404 = vpop.f32.mrb[0].mxu0
  %v405 = vadd.f32 %v63, %v404
  %v406 = vpop.f32.mrb[0].mxu0
  %v407 = vadd.f32 %v68, %v406
  %v408 = vpop.f32.mrb[0].mxu0
  %v409 = vadd.f32 %v68, %v408
  %410 = vdwg.mxu0
  %v411 = vmax.f32 %v274, 0.0
  %v412 = vmax.f32 %v276, 0.0
  %v413 = vmax.f32 %v317, 0.0
  %v414 = vmax.f32 %v319, 0.0
  %v415 = vmax.f32 %v360, 0.0
  %v416 = vmax.f32 %v362, 0.0
  %v417 = vmax.f32 %v403, 0.0
  %v418 = vmax.f32 %v405, 0.0
  %v419 = vmax.f32 %v278, 0.0
  %v420 = vmax.f32 %v280, 0.0
  %v421 = vmax.f32 %v321, 0.0
  %v422 = vmax.f32 %v323, 0.0
  %v423 = vmax.f32 %v364, 0.0
  %v424 = vmax.f32 %v366, 0.0
  %v425 = vmax.f32 %v407, 0.0
  %v426 = vmax.f32 %v409, 0.0
  %v427 = vld [vmem:[%s3] sm:$0xff]
  %v428 = vld [vmem:[%s3 + $0x8] sm:$0xff]
  %v429 = vld [vmem:[%s3 + $0x10] sm:$0xff]
  %v430 = vld [vmem:[%s3 + $0x18] sm:$0xff]
  %v431 = vld [vmem:[%s3 + $0x20] sm:$0xff]
  %v432 = vld [vmem:[%s3 + $0x28] sm:$0xff]
  %v433 = vld [vmem:[%s3 + $0x30] sm:$0xff]
  %v434 = vld [vmem:[%s3 + $0x38] sm:$0xff]
  %v435 = vld [vmem:[%s3 + $0x40] sm:$0xff]
  %v436 = vld [vmem:[%s3 + $0x48] sm:$0xff]
  %v437 = vld [vmem:[%s3 + $0x50] sm:$0xff]
  %v438 = vld [vmem:[%s3 + $0x58] sm:$0xff]
  %v439 = vld [vmem:[%s3 + $0x60] sm:$0xff]
  %v440 = vld [vmem:[%s3 + $0x68] sm:$0xff]
  %v441 = vld [vmem:[%s3 + $0x70] sm:$0xff]
  %v442 = vld [vmem:[%s3 + $0x78] sm:$0xff]
  %v443 = vld [vmem:[%s3 + $0x80] sm:$0xff]
  %v444 = vld [vmem:[%s3 + $0x88] sm:$0xff]
  %v445 = vld [vmem:[%s3 + $0x90] sm:$0xff]
  %v446 = vld [vmem:[%s3 + $0x98] sm:$0xff]
  %v447 = vld [vmem:[%s3 + $0xa0] sm:$0xff]
  %v448 = vld [vmem:[%s3 + $0xa8] sm:$0xff]
  %v449 = vld [vmem:[%s3 + $0xb0] sm:$0xff]
  %v450 = vld [vmem:[%s3 + $0xb8] sm:$0xff]
  %v451 = vld [vmem:[%s3 + $0xc0] sm:$0xff]
  %v452 = vld [vmem:[%s3 + $0xc8] sm:$0xff]
  %v453 = vld [vmem:[%s3 + $0xd0] sm:$0xff]
  %v454 = vld [vmem:[%s3 + $0xd8] sm:$0xff]
  %v455 = vld [vmem:[%s3 + $0xe0] sm:$0xff]
  %v456 = vld [vmem:[%s3 + $0xe8] sm:$0xff]
  %v457 = vld [vmem:[%s3 + $0xf0] sm:$0xff]
  %v458 = vld [vmem:[%s3 + $0xf8] sm:$0xff]
  %v459 = vld [vmem:[%s3 + $0x100] sm:$0xff]
  %v460 = vld [vmem:[%s3 + $0x108] sm:$0xff]
  %v461 = vld [vmem:[%s3 + $0x110] sm:$0xff]
  %v462 = vld [vmem:[%s3 + $0x118] sm:$0xff]
  %v463 = vld [vmem:[%s3 + $0x120] sm:$0xff]
  %v464 = vld [vmem:[%s3 + $0x128] sm:$0xff]
  %v465 = vld [vmem:[%s3 + $0x130] sm:$0xff]
  %v466 = vld [vmem:[%s3 + $0x138] sm:$0xff]
  %v467 = vld [vmem:[%s3 + $0x140] sm:$0xff]
  %v468 = vld [vmem:[%s3 + $0x148] sm:$0xff]
  %v469 = vld [vmem:[%s3 + $0x150] sm:$0xff]
  %v470 = vld [vmem:[%s3 + $0x158] sm:$0xff]
  %v471 = vld [vmem:[%s3 + $0x160] sm:$0xff]
  %v472 = vld [vmem:[%s3 + $0x168] sm:$0xff]
  %v473 = vld [vmem:[%s3 + $0x170] sm:$0xff]
  %v474 = vld [vmem:[%s3 + $0x178] sm:$0xff]
  %v475 = vld [vmem:[%s3 + $0x180] sm:$0xff]
  %v476 = vld [vmem:[%s3 + $0x188] sm:$0xff]
  %v477 = vld [vmem:[%s3 + $0x190] sm:$0xff]
  %v478 = vld [vmem:[%s3 + $0x198] sm:$0xff]
  %v479 = vld [vmem:[%s3 + $0x1a0] sm:$0xff]
  %v480 = vld [vmem:[%s3 + $0x1a8] sm:$0xff]
  %v481 = vld [vmem:[%s3 + $0x1b0] sm:$0xff]
  %v482 = vld [vmem:[%s3 + $0x1b8] sm:$0xff]
  %v483 = vld [vmem:[%s3 + $0x1c0] sm:$0xff]
  %v484 = vld [vmem:[%s3 + $0x1c8] sm:$0xff]
  %v485 = vld [vmem:[%s3 + $0x1d0] sm:$0xff]
  %v486 = vld [vmem:[%s3 + $0x1d8] sm:$0xff]
  %v487 = vld [vmem:[%s3 + $0x1e0] sm:$0xff]
  %v488 = vld [vmem:[%s3 + $0x1e8] sm:$0xff]
  %v489 = vld [vmem:[%s3 + $0x1f0] sm:$0xff]
  %v490 = vld [vmem:[%s3 + $0x1f8] sm:$0xff]
  %v491 = vld [vmem:[%s3 + $0x200] sm:$0xff]
  %v492 = vld [vmem:[%s3 + $0x208] sm:$0xff]
  %v493 = vld [vmem:[%s3 + $0x210] sm:$0xff]
  %v494 = vld [vmem:[%s3 + $0x218] sm:$0xff]
  %v495 = vld [vmem:[%s3 + $0x220] sm:$0xff]
  %v496 = vld [vmem:[%s3 + $0x228] sm:$0xff]
  %v497 = vld [vmem:[%s3 + $0x230] sm:$0xff]
  %v498 = vld [vmem:[%s3 + $0x238] sm:$0xff]
  %v499 = vld [vmem:[%s3 + $0x240] sm:$0xff]
  %v500 = vld [vmem:[%s3 + $0x248] sm:$0xff]
  %v501 = vld [vmem:[%s3 + $0x250] sm:$0xff]
  %v502 = vld [vmem:[%s3 + $0x258] sm:$0xff]
  %v503 = vld [vmem:[%s3 + $0x260] sm:$0xff]
  %v504 = vld [vmem:[%s3 + $0x268] sm:$0xff]
  %v505 = vld [vmem:[%s3 + $0x270] sm:$0xff]
  %v506 = vld [vmem:[%s3 + $0x278] sm:$0xff]
  %v507 = vld [vmem:[%s3 + $0x280] sm:$0xff]
  %v508 = vld [vmem:[%s3 + $0x288] sm:$0xff]
  %v509 = vld [vmem:[%s3 + $0x290] sm:$0xff]
  %v510 = vld [vmem:[%s3 + $0x298] sm:$0xff]
  %v511 = vld [vmem:[%s3 + $0x2a0] sm:$0xff]
  %v512 = vld [vmem:[%s3 + $0x2a8] sm:$0xff]
  %v513 = vld [vmem:[%s3 + $0x2b0] sm:$0xff]
  %v514 = vld [vmem:[%s3 + $0x2b8] sm:$0xff]
  %v515 = vld [vmem:[%s3 + $0x2c0] sm:$0xff]
  %v516 = vld [vmem:[%s3 + $0x2c8] sm:$0xff]
  %v517 = vld [vmem:[%s3 + $0x2d0] sm:$0xff]
  %v518 = vld [vmem:[%s3 + $0x2d8] sm:$0xff]
  %v519 = vld [vmem:[%s3 + $0x2e0] sm:$0xff]
  %v520 = vld [vmem:[%s3 + $0x2e8] sm:$0xff]
  %v521 = vld [vmem:[%s3 + $0x2f0] sm:$0xff]
  %v522 = vld [vmem:[%s3 + $0x2f8] sm:$0xff]
  %v523 = vld [vmem:[%s3 + $0x300] sm:$0xff]
  %v524 = vld [vmem:[%s3 + $0x308] sm:$0xff]
  %v525 = vld [vmem:[%s3 + $0x310] sm:$0xff]
  %v526 = vld [vmem:[%s3 + $0x318] sm:$0xff]
  %v527 = vld [vmem:[%s3 + $0x320] sm:$0xff]
  %v528 = vld [vmem:[%s3 + $0x328] sm:$0xff]
  %v529 = vld [vmem:[%s3 + $0x330] sm:$0xff]
  %v530 = vld [vmem:[%s3 + $0x338] sm:$0xff]
  %v531 = vld [vmem:[%s3 + $0x340] sm:$0xff]
  %v532 = vld [vmem:[%s3 + $0x348] sm:$0xff]
  %v533 = vld [vmem:[%s3 + $0x350] sm:$0xff]
  %v534 = vld [vmem:[%s3 + $0x358] sm:$0xff]
  %v535 = vld [vmem:[%s3 + $0x360] sm:$0xff]
  %v536 = vld [vmem:[%s3 + $0x368] sm:$0xff]
  %v537 = vld [vmem:[%s3 + $0x370] sm:$0xff]
  %v538 = vld [vmem:[%s3 + $0x378] sm:$0xff]
  %v539 = vld [vmem:[%s3 + $0x380] sm:$0xff]
  %v540 = vld [vmem:[%s3 + $0x388] sm:$0xff]
  %v541 = vld [vmem:[%s3 + $0x390] sm:$0xff]
  %v542 = vld [vmem:[%s3 + $0x398] sm:$0xff]
  %v543 = vld [vmem:[%s3 + $0x3a0] sm:$0xff]
  %v544 = vld [vmem:[%s3 + $0x3a8] sm:$0xff]
  %v545 = vld [vmem:[%s3 + $0x3b0] sm:$0xff]
  %v546 = vld [vmem:[%s3 + $0x3b8] sm:$0xff]
  %v547 = vld [vmem:[%s3 + $0x3c0] sm:$0xff]
  %v548 = vld [vmem:[%s3 + $0x3c8] sm:$0xff]
  %v549 = vld [vmem:[%s3 + $0x3d0] sm:$0xff]
  %v550 = vld [vmem:[%s3 + $0x3d8] sm:$0xff]
  %v551 = vld [vmem:[%s3 + $0x3e0] sm:$0xff]
  %v552 = vld [vmem:[%s3 + $0x3e8] sm:$0xff]
  %v553 = vld [vmem:[%s3 + $0x3f0] sm:$0xff]
  %v554 = vld [vmem:[%s3 + $0x3f8] sm:$0xff]
  %555 = vmatprep.subr.mxu0 0.0
  %556 = vmatpush1.msra.mxu0 %v427
  %557 = vmatprep.subr.mxu0 0.0
  %558 = vmatpush1.msra.mxu0 %v428
  %559 = vmatprep.subr.mxu0 0.0
  %560 = vmatpush1.msra.mxu0 %v429
  %561 = vmatprep.subr.mxu0 0.0
  %562 = vmatpush1.msra.mxu0 %v430
  %563 = vmatprep.subr.mxu0 0.0
  %564 = vmatpush1.msra.mxu0 %v431
  %565 = vmatprep.subr.mxu0 0.0
  %566 = vmatpush1.msra.mxu0 %v432
  %567 = vmatprep.subr.mxu0 0.0
  %568 = vmatpush1.msra.mxu0 %v433
  %569 = vmatprep.subr.mxu0 0.0
  %570 = vmatpush1.msra.mxu0 %v434
  %571 = vmatprep.subr.mxu0 0.0
  %572 = vmatpush1.msra.mxu0 %v435
  %573 = vmatprep.subr.mxu0 0.0
  %574 = vmatpush1.msra.mxu0 %v436
  %575 = vmatprep.subr.mxu0 0.0
  %576 = vmatpush1.msra.mxu0 %v437
  %577 = vmatprep.subr.mxu0 0.0
  %578 = vmatpush1.msra.mxu0 %v438
  %579 = vmatprep.subr.mxu0 0.0
  %580 = vmatpush1.msra.mxu0 %v439
  %581 = vmatprep.subr.mxu0 0.0
  %582 = vmatpush1.msra.mxu0 %v440
  %583 = vmatprep.subr.mxu0 0.0
  %584 = vmatpush1.msra.mxu0 %v441
  %585 = vmatprep.subr.mxu0 0.0
  %586 = vmatpush1.msra.mxu0 %v442
  %587 = vmatprep.subr.mxu0 0.0
  %588 = vmatpush1.msra.mxu0 %v443
  %589 = vmatprep.subr.mxu0 0.0
  %590 = vmatpush1.msra.mxu0 %v444
  %591 = vmatprep.subr.mxu0 0.0
  %592 = vmatpush1.msra.mxu0 %v445
  %593 = vmatprep.subr.mxu0 0.0
  %594 = vmatpush1.msra.mxu0 %v446
  %595 = vmatprep.subr.mxu0 0.0
  %596 = vmatpush1.msra.mxu0 %v447
  %597 = vmatprep.subr.mxu0 0.0
  %598 = vmatpush1.msra.mxu0 %v448
  %599 = vmatprep.subr.mxu0 0.0
  %600 = vmatpush1.msra.mxu0 %v449
  %601 = vmatprep.subr.mxu0 0.0
  %602 = vmatpush1.msra.mxu0 %v450
  %603 = vmatprep.subr.mxu0 0.0
  %604 = vmatpush1.msra.mxu0 %v451
  %605 = vmatprep.subr.mxu0 0.0
  %606 = vmatpush1.msra.mxu0 %v452
  %607 = vmatprep.subr.mxu0 0.0
  %608 = vmatpush1.msra.mxu0 %v453
  %609 = vmatprep.subr.mxu0 0.0
  %610 = vmatpush1.msra.mxu0 %v454
  %611 = vmatprep.subr.mxu0 0.0
  %612 = vmatpush1.msra.mxu0 %v455
  %613 = vmatprep.subr.mxu0 0.0
  %614 = vmatpush1.msra.mxu0 %v456
  %615 = vmatprep.subr.mxu0 0.0
  %616 = vmatpush1.msra.mxu0 %v457
  %617 = vmatprep.subr.mxu0 0.0
  %618 = vmatpush1.msra.mxu0 %v458
  %619 = vmatprep.mubr.f32.mxu0 %v412
  %620 = vmatmul.mubr.f32.gmra.mrb[0].mxu0 %v411
  %v621 = vpop.f32.mrb[0].mxu0
  %v622 = vadd.f32 0.0, %v621
  %v623 = vpop.f32.mrb[0].mxu0
  %624 = vmatprep.mubr.f32.mxu0 %v420
  %625 = vmatmul.mubr.f32.gmra.mrb[0].mxu0 %v419
  %v626 = vpop.f32.mrb[0].mxu0
  %v627 = vadd.f32 0.0, %v626
  %v628 = vpop.f32.mrb[0].mxu0
  %629 = vdwg.mxu0
  %630 = vmatprep.subr.mxu0 0.0
  %631 = vmatpush1.msra.mxu0 %v459
  %632 = vmatprep.subr.mxu0 0.0
  %633 = vmatpush1.msra.mxu0 %v460
  %634 = vmatprep.subr.mxu0 0.0
  %635 = vmatpush1.msra.mxu0 %v461
  %636 = vmatprep.subr.mxu0 0.0
  %637 = vmatpush1.msra.mxu0 %v462
  %638 = vmatprep.subr.mxu0 0.0
  %639 = vmatpush1.msra.mxu0 %v463
  %640 = vmatprep.subr.mxu0 0.0
  %641 = vmatpush1.msra.mxu0 %v464
  %642 = vmatprep.subr.mxu0 0.0
  %643 = vmatpush1.msra.mxu0 %v465
  %644 = vmatprep.subr.mxu0 0.0
  %645 = vmatpush1.msra.mxu0 %v466
  %646 = vmatprep.subr.mxu0 0.0
  %647 = vmatpush1.msra.mxu0 %v467
  %648 = vmatprep.subr.mxu0 0.0
  %649 = vmatpush1.msra.mxu0 %v468
  %650 = vmatprep.subr.mxu0 0.0
  %651 = vmatpush1.msra.mxu0 %v469
  %652 = vmatprep.subr.mxu0 0.0
  %653 = vmatpush1.msra.mxu0 %v470
  %654 = vmatprep.subr.mxu0 0.0
  %655 = vmatpush1.msra.mxu0 %v471
  %656 = vmatprep.subr.mxu0 0.0
  %657 = vmatpush1.msra.mxu0 %v472
  %658 = vmatprep.subr.mxu0 0.0
  %659 = vmatpush1.msra.mxu0 %v473
  %660 = vmatprep.subr.mxu0 0.0
  %661 = vmatpush1.msra.mxu0 %v474
  %662 = vmatprep.subr.mxu0 0.0
  %663 = vmatpush1.msra.mxu0 %v475
  %664 = vmatprep.subr.mxu0 0.0
  %665 = vmatpush1.msra.mxu0 %v476
  %666 = vmatprep.subr.mxu0 0.0
  %667 = vmatpush1.msra.mxu0 %v477
  %668 = vmatprep.subr.mxu0 0.0
  %669 = vmatpush1.msra.mxu0 %v478
  %670 = vmatprep.subr.mxu0 0.0
  %671 = vmatpush1.msra.mxu0 %v479
  %672 = vmatprep.subr.mxu0 0.0
  %673 = vmatpush1.msra.mxu0 %v480
  %674 = vmatprep.subr.mxu0 0.0
  %675 = vmatpush1.msra.mxu0 %v481
  %676 = vmatprep.subr.mxu0 0.0
  %677 = vmatpush1.msra.mxu0 %v482
  %678 = vmatprep.subr.mxu0 0.0
  %679 = vmatpush1.msra.mxu0 %v483
  %680 = vmatprep.subr.mxu0 0.0
  %681 = vmatpush1.msra.mxu0 %v484
  %682 = vmatprep.subr.mxu0 0.0
  %683 = vmatpush1.msra.mxu0 %v485
  %684 = vmatprep.subr.mxu0 0.0
  %685 = vmatpush1.msra.mxu0 %v486
  %686 = vmatprep.subr.mxu0 0.0
  %687 = vmatpush1.msra.mxu0 %v487
  %688 = vmatprep.subr.mxu0 0.0
  %689 = vmatpush1.msra.mxu0 %v488
  %690 = vmatprep.subr.mxu0 0.0
  %691 = vmatpush1.msra.mxu0 %v489
  %692 = vmatprep.subr.mxu0 0.0
  %693 = vmatpush1.msra.mxu0 %v490
  %694 = vmatprep.mubr.f32.mxu0 %v414
  %695 = vmatmul.mubr.f32.gmra.mrb[0].mxu0 %v413
  %v696 = vpop.f32.mrb[0].mxu0
  %v697 = vadd.f32 %v622, %v696
  %v698 = vpop.f32.mrb[0].mxu0
  %699 = vmatprep.mubr.f32.mxu0 %v422
  %700 = vmatmul.mubr.f32.gmra.mrb[0].mxu0 %v421
  %v701 = vpop.f32.mrb[0].mxu0
  %v702 = vadd.f32 %v627, %v701
  %v703 = vpop.f32.mrb[0].mxu0
  %704 = vdwg.mxu0
  %705 = vmatprep.subr.mxu0 0.0
  %706 = vmatpush1.msra.mxu0 %v491
  %707 = vmatprep.subr.mxu0 0.0
  %708 = vmatpush1.msra.mxu0 %v492
  %709 = vmatprep.subr.mxu0 0.0
  %710 = vmatpush1.msra.mxu0 %v493
  %711 = vmatprep.subr.mxu0 0.0
  %712 = vmatpush1.msra.mxu0 %v494
  %713 = vmatprep.subr.mxu0 0.0
  %714 = vmatpush1.msra.mxu0 %v495
  %715 = vmatprep.subr.mxu0 0.0
  %716 = vmatpush1.msra.mxu0 %v496
  %717 = vmatprep.subr.mxu0 0.0
  %718 = vmatpush1.msra.mxu0 %v497
  %719 = vmatprep.subr.mxu0 0.0
  %720 = vmatpush1.msra.mxu0 %v498
  %721 = vmatprep.subr.mxu0 0.0
  %722 = vmatpush1.msra.mxu0 %v499
  %723 = vmatprep.subr.mxu0 0.0
  %724 = vmatpush1.msra.mxu0 %v500
  %725 = vmatprep.subr.mxu0 0.0
  %726 = vmatpush1.msra.mxu0 %v501
  %727 = vmatprep.subr.mxu0 0.0
  %728 = vmatpush1.msra.mxu0 %v502
  %729 = vmatprep.subr.mxu0 0.0
  %730 = vmatpush1.msra.mxu0 %v503
  %731 = vmatprep.subr.mxu0 0.0
  %732 = vmatpush1.msra.mxu0 %v504
  %733 = vmatprep.subr.mxu0 0.0
  %734 = vmatpush1.msra.mxu0 %v505
  %735 = vmatprep.subr.mxu0 0.0
  %736 = vmatpush1.msra.mxu0 %v506
  %737 = vmatprep.subr.mxu0 0.0
  %738 = vmatpush1.msra.mxu0 %v507
  %739 = vmatprep.subr.mxu0 0.0
  %740 = vmatpush1.msra.mxu0 %v508
  %741 = vmatprep.subr.mxu0 0.0
  %742 = vmatpush1.msra.mxu0 %v509
  %743 = vmatprep.subr.mxu0 0.0
  %744 = vmatpush1.msra.mxu0 %v510
  %745 = vmatprep.subr.mxu0 0.0
  %746 = vmatpush1.msra.mxu0 %v511
  %747 = vmatprep.subr.mxu0 0.0
  %748 = vmatpush1.msra.mxu0 %v512
  %749 = vmatprep.subr.mxu0 0.0
  %750 = vmatpush1.msra.mxu0 %v513
  %751 = vmatprep.subr.mxu0 0.0
  %752 = vmatpush1.msra.mxu0 %v514
  %753 = vmatprep.subr.mxu0 0.0
  %754 = vmatpush1.msra.mxu0 %v515
  %755 = vmatprep.subr.mxu0 0.0
  %756 = vmatpush1.msra.mxu0 %v516
  %757 = vmatprep.subr.mxu0 0.0
  %758 = vmatpush1.msra.mxu0 %v517
  %759 = vmatprep.subr.mxu0 0.0
  %760 = vmatpush1.msra.mxu0 %v518
  %761 = vmatprep.subr.mxu0 0.0
  %762 = vmatpush1.msra.mxu0 %v519
  %763 = vmatprep.subr.mxu0 0.0
  %764 = vmatpush1.msra.mxu0 %v520
  %765 = vmatprep.subr.mxu0 0.0
  %766 = vmatpush1.msra.mxu0 %v521
  %767 = vmatprep.subr.mxu0 0.0
  %768 = vmatpush1.msra.mxu0 %v522
  %769 = vmatprep.mubr.f32.mxu0 %v416
  %770 = vmatmul.mubr.f32.gmra.mrb[0].mxu0 %v415
  %v771 = vpop.f32.mrb[0].mxu0
  %v772 = vadd.f32 %v697, %v771
  %v773 = vpop.f32.mrb[0].mxu0
  %774 = vmatprep.mubr.f32.mxu0 %v424
  %775 = vmatmul.mubr.f32.gmra.mrb[0].mxu0 %v423
  %v776 = vpop.f32.mrb[0].mxu0
  %v777 = vadd.f32 %v702, %v776
  %v778 = vpop.f32.mrb[0].mxu0
  %779 = vdwg.mxu0
  %780 = vmatprep.subr.mxu0 0.0
  %781 = vmatpush1.msra.mxu0 %v523
  %782 = vmatprep.subr.mxu0 0.0
  %783 = vmatpush1.msra.mxu0 %v524
  %784 = vmatprep.subr.mxu0 0.0
  %785 = vmatpush1.msra.mxu0 %v525
  %786 = vmatprep.subr.mxu0 0.0
  %787 = vmatpush1.msra.mxu0 %v526
  %788 = vmatprep.subr.mxu0 0.0
  %789 = vmatpush1.msra.mxu0 %v527
  %790 = vmatprep.subr.mxu0 0.0
  %791 = vmatpush1.msra.mxu0 %v528
  %792 = vmatprep.subr.mxu0 0.0
  %793 = vmatpush1.msra.mxu0 %v529
  %794 = vmatprep.subr.mxu0 0.0
  %795 = vmatpush1.msra.mxu0 %v530
  %796 = vmatprep.subr.mxu0 0.0
  %797 = vmatpush1.msra.mxu0 %v531
  %798 = vmatprep.subr.mxu0 0.0
  %799 = vmatpush1.msra.mxu0 %v532
  %800 = vmatprep.subr.mxu0 0.0
  %801 = vmatpush1.msra.mxu0 %v533
  %802 = vmatprep.subr.mxu0 0.0
  %803 = vmatpush1.msra.mxu0 %v534
  %804 = vmatprep.subr.mxu0 0.0
  %805 = vmatpush1.msra.mxu0 %v535
  %806 = vmatprep.subr.mxu0 0.0
  %807 = vmatpush1.msra.mxu0 %v536
  %808 = vmatprep.subr.mxu0 0.0
  %809 = vmatpush1.msra.mxu0 %v537
  %810 = vmatprep.subr.mxu0 0.0
  %811 = vmatpush1.msra.mxu0 %v538
  %812 = vmatprep.subr.mxu0 0.0
  %813 = vmatpush1.msra.mxu0 %v539
  %814 = vmatprep.subr.mxu0 0.0
  %815 = vmatpush1.msra.mxu0 %v540
  %816 = vmatprep.subr.mxu0 0.0
  %817 = vmatpush1.msra.mxu0 %v541
  %818 = vmatprep.subr.mxu0 0.0
  %819 = vmatpush1.msra.mxu0 %v542
  %820 = vmatprep.subr.mxu0 0.0
  %821 = vmatpush1.msra.mxu0 %v543
  %822 = vmatprep.subr.mxu0 0.0
  %823 = vmatpush1.msra.mxu0 %v544
  %824 = vmatprep.subr.mxu0 0.0
  %825 = vmatpush1.msra.mxu0 %v545
  %826 = vmatprep.subr.mxu0 0.0
  %827 = vmatpush1.msra.mxu0 %v546
  %828 = vmatprep.subr.mxu0 0.0
  %829 = vmatpush1.msra.mxu0 %v547
  %830 = vmatprep.subr.mxu0 0.0
  %831 = vmatpush1.msra.mxu0 %v548
  %832 = vmatprep.subr.mxu0 0.0
  %833 = vmatpush1.msra.mxu0 %v549
  %834 = vmatprep.subr.mxu0 0.0
  %835 = vmatpush1.msra.mxu0 %v550
  %836 = vmatprep.subr.mxu0 0.0
  %837 = vmatpush1.msra.mxu0 %v551
  %838 = vmatprep.subr.mxu0 0.0
  %839 = vmatpush1.msra.mxu0 %v552
  %840 = vmatprep.subr.mxu0 0.0
  %841 = vmatpush1.msra.mxu0 %v553
  %842 = vmatprep.subr.mxu0 0.0
  %843 = vmatpush1.msra.mxu0 %v554
  %844 = vmatprep.mubr.f32.mxu0 %v418
  %845 = vmatmul.mubr.f32.gmra.mrb[0].mxu0 %v417
  %v846 = vpop.f32.mrb[0].mxu0
  %v847 = vadd.f32 %v772, %v846
  %v848 = vpop.f32.mrb[0].mxu0
  %849 = vmatprep.mubr.f32.mxu0 %v426
  %850 = vmatmul.mubr.f32.gmra.mrb[0].mxu0 %v425
  %v851 = vpop.f32.mrb[0].mxu0
  %v852 = vadd.f32 %v777, %v851
  %v853 = vpop.f32.mrb[0].mxu0
  %854 = vdwg.mxu0
  %v855 = vld [vmem:[%s4] sm:$0x1f]
  %v856 = vld [vmem:[%s5] sm:$0x1f]
  %858 = vset.pattern.permute.xlu0 0
  %859 = vperm.xlu0 %858, %v856
  %v860 = vpop.permute.xlu0 %859
  %vm862 = vcmask 130048
  %v864 = vsel %vm862, %v855, 0
  %866 = vmatprep.subr.mxu0 0.0
  %867 = vmatpush1.msra.mxu0 %v847
  %868 = vmatprep.subr.mxu0 0.0
  %869 = vmatpush1.msra.mxu0 %v852
  %870 = vmatprep.subr.mxu0 0.0
  %871 = vmatpush1.msra.mxu0 0.0
  %872 = vmatprep.subr.mxu0 0.0
  %873 = vmatpush1.msra.mxu0 0.0
  %874 = vmatprep.subr.mxu0 0.0
  %875 = vmatpush1.msra.mxu0 0.0
  %876 = vmatprep.subr.mxu0 0.0
  %877 = vmatpush1.msra.mxu0 0.0
  %878 = vmatprep.subr.mxu0 0.0
  %879 = vmatpush1.msra.mxu0 0.0
  %880 = vmatprep.subr.mxu0 0.0
  %881 = vmatpush1.msra.mxu0 0.0
  %882 = vmatprep.subr.mxu0 0.0
  %883 = vmatpush1.msra.mxu0 0.0
  %884 = vmatprep.subr.mxu0 0.0
  %885 = vmatpush1.msra.mxu0 0.0
  %886 = vmatprep.subr.mxu0 0.0
  %887 = vmatpush1.msra.mxu0 0.0
  %888 = vmatprep.subr.mxu0 0.0
  %889 = vmatpush1.msra.mxu0 0.0
  %890 = vmatprep.subr.mxu0 0.0
  %891 = vmatpush1.msra.mxu0 0.0
  %892 = vmatprep.subr.mxu0 0.0
  %893 = vmatpush1.msra.mxu0 0.0
  %894 = vmatprep.subr.mxu0 0.0
  %895 = vmatpush1.msra.mxu0 0.0
  %896 = vmatprep.subr.mxu0 0.0
  %897 = vmatpush1.msra.mxu0 0.0
  %898 = vmatprep.subr.mxu0 0.0
  %899 = vmatpush1.msra.mxu0 0.0
  %900 = vmatprep.subr.mxu0 0.0
  %901 = vmatpush1.msra.mxu0 0.0
  %902 = vmatprep.subr.mxu0 0.0
  %903 = vmatpush1.msra.mxu0 0.0
  %904 = vmatprep.subr.mxu0 0.0
  %905 = vmatpush1.msra.mxu0 0.0
  %906 = vmatprep.subr.mxu0 0.0
  %907 = vmatpush1.msra.mxu0 0.0
  %908 = vmatprep.subr.mxu0 0.0
  %909 = vmatpush1.msra.mxu0 0.0
  %910 = vmatprep.subr.mxu0 0.0
  %911 = vmatpush1.msra.mxu0 0.0
  %912 = vmatprep.subr.mxu0 0.0
  %913 = vmatpush1.msra.mxu0 0.0
  %914 = vmatprep.subr.mxu0 0.0
  %915 = vmatpush1.msra.mxu0 0.0
  %916 = vmatprep.subr.mxu0 0.0
  %917 = vmatpush1.msra.mxu0 0.0
  %918 = vmatprep.subr.mxu0 0.0
  %919 = vmatpush1.msra.mxu0 0.0
  %920 = vmatprep.subr.mxu0 0.0
  %921 = vmatpush1.msra.mxu0 0.0
  %922 = vmatprep.subr.mxu0 0.0
  %923 = vmatpush1.msra.mxu0 0.0
  %924 = vmatprep.subr.mxu0 0.0
  %925 = vmatpush1.msra.mxu0 0.0
  %926 = vmatprep.subr.mxu0 0.0
  %927 = vmatpush1.msra.mxu0 0.0
  %928 = vmatprep.subr.mxu0 0.0
  %929 = vmatpush1.msra.mxu0 0.0
  %930 = vmatprep.mubr.f32.mxu0 0.0
  %931 = vmatmul.mubr.f32.gmra.mrb[0].mxu0 %v864
  %v932 = vpop.f32.mrb[0].mxu0
  %v933 = vadd.f32 %v860, %v932
  %v934 = vpop.f32.mrb[0].mxu0
  %935 = vdwg.mxu0
  %vm936 = vcmask 12288
  %937 = vst.msk [vmem:[%s6] sm:$0x1f] %vm936, %v933
  // Predicated region
  $region26: #{resnet_pair_forward.1} parent=0 // pred_check
    _
  $region27: #{resnet_pair_forward.1} parent=0 // pred_check_branch
    %939 = sbr.rel (0) target = $region29
  $region28: #{resnet_pair_forward.1} parent=0 // pred_region
    _
  $region29: #{resnet_pair_forward.1} parent=0 // pred_fallthru
    _
  // Predicated region
  $region30: #{resnet_pair_forward.1} parent=0 // pred_check
    _
  $region31: #{resnet_pair_forward.1} parent=0 // pred_check_branch
    %941 = sbr.rel (0) target = $region33
  $region32: #{resnet_pair_forward.1} parent=0 // pred_region
    _
  $region33: #{resnet_pair_forward.1} parent=0 // pred_fallthru
    _

</llo_original>
